<compile_context>
chip_gen: v6e
topology: v6e:2x2x1
jax: 0.10.0
libtpu: 0.0.40
codegen_flags: <defaults>
</compile_context>

<pallas_src>
import functools

import jax
import jax.numpy as jnp
from jax.experimental import pallas as pl
from jax.experimental.pallas import tpu as pltpu

LANES = 128  # one full vreg of f32 lanes


# --------------------------------------------------------------------------
# Kernel
# --------------------------------------------------------------------------
def bridge_kernel(x_ref, t1_ref, t2_ref, b2_ref, o_ref, *, H):
    """Fused (conv3x3 + BN + ReLU) x 2 on one block of NB images.

    x_ref : (NB*H, 128)      lane = w*Cin+ci for lanes <64, lane 64 = 1.0, rest 0
    t1_ref: (3*128, 128)     conv1 row-Toeplitz (BN scale + shift folded;
                             W-halo and lane padding folded as zero rows)
    t2_ref: (3*128, 128)     conv2 row-Toeplitz (BN scale folded, W-halo folded)
    b2_ref: (1, 128)         conv2 folded shift (lane = w*Cout+co)
    o_ref : (NB*H, 128)      lane-dense output rows (lane = w*Cout+co)
    """
    x = x_ref[...]                                      # (MB, 128) f32

    def row_shifts(a):
        # a[i-1] with a zero row at the top of each image, and a[i+1] with a
        # zero row at the bottom.  pltpu.roll is an XLU sublane rotation (free
        # relative to VPU/vst slots); the mask kills the circular wrap and any
        # leakage across image boundaries inside the block.
        m, l = a.shape
        row = jax.lax.broadcasted_iota(jnp.int32, (m, l), 0) % H
        up = jnp.where(row > 0, pltpu.roll(a, 1, 0), 0.0)
        dn = jnp.where(row < H - 1, pltpu.roll(a, m - 1, 0), 0.0)
        return up, dn

    # ---- conv1 + BN(eval) + ReLU : one MXU matmul, K = 3*128 ----
    xu, xd = row_shifts(x)
    lhs1 = jnp.concatenate([xu, x, xd], axis=-1)        # (MB, 384), vreg-aligned
    y1 = jax.lax.dot_general(lhs1, t1_ref[...], (((1,), (0,)), ((), ())),
                             preferred_element_type=jnp.float32)
    y1 = jnp.maximum(y1, 0.0)                           # shift folded into t1

    # ---- conv2 + BN(eval) + ReLU : one MXU matmul, K = 3*128 ----
    yu, yd = row_shifts(y1)
    lhs2 = jnp.concatenate([yu, y1, yd], axis=-1)       # (MB, 384), vreg-aligned
    y2 = jax.lax.dot_general(lhs2, t2_ref[...], (((1,), (0,)), ((), ())),
                             preferred_element_type=jnp.float32)
    o_ref[...] = jnp.maximum(y2 + b2_ref[...], 0.0).astype(o_ref.dtype)


# --------------------------------------------------------------------------
# Wrapper-side weight preparation
# --------------------------------------------------------------------------
def make_row_toeplitz_blocks(w, W):
    """(3, 3, Cin, Cout) -> (3, W*Cin, W*Cout) per-kh row-Toeplitz blocks.

    T[kh, wp*Cin+ci, w*Cout+co] = w[kh, wp-w+1, ci, co]  (0 outside the 3 taps),
    so the W-halo ('SAME' zero padding along W) is folded into zero taps.
    """
    KH, KW, Cin, Cout = w.shape
    wp = jnp.arange(W)[:, None]                         # input column
    wo = jnp.arange(W)[None, :]                         # output column
    kw = wp - wo + 1
    valid = (kw >= 0) & (kw < KW)
    g = w[:, jnp.clip(kw, 0, KW - 1), :, :]             # (KH, W, W, Cin, Cout)
    g = jnp.where(valid[None, :, :, None, None], g, 0.0)
    g = jnp.transpose(g, (0, 1, 3, 2, 4))               # (KH, Win, Cin, Wout, Cout)
    return g.reshape(KH, W * Cin, W * Cout)


def bridge_forward(x_nchw, params):
    """x_nchw: (N, Cin, H, W) float32 -> (N, Cout, H, W) float32."""
    (w1, s1, b1, w2, s2, b2) = params
    N, Cin, H, W = x_nchw.shape
    Cout = w1.shape[-1]
    WCin, WCout = W * Cin, W * Cout
    assert WCin + 1 <= LANES, "layout assumes W*Cin + ones-lane fits in 128 lanes"

    # NCHW -> NHWC -> lane-dense rows, lane-padded to a full vreg.  Lane WCin is
    # a constant 1.0 so conv1's folded BN shift rides inside the matmul.
    x = jnp.transpose(x_nchw, (0, 2, 3, 1)).reshape(N, H, WCin)
    x_slab = jnp.concatenate(
        [x,
         jnp.ones((N, H, 1), jnp.float32),
         jnp.zeros((N, H, LANES - WCin - 1), jnp.float32)],
        axis=-1).reshape(N * H, LANES)

    # Fold BN scale into conv weights; build Toeplitz matmul weights.
    t1_blk = make_row_toeplitz_blocks(w1 * s1, W)       # (3, W*Cin, W*Cout)
    t1 = jnp.zeros((3, LANES, WCout), jnp.float32)
    t1 = t1.at[:, :WCin, :].set(t1_blk)                 # pad rows match lane pad
    t1 = t1.at[1, WCin, :].set(jnp.tile(b1, W))         # bias via the ones lane
    t1 = t1.reshape(3 * LANES, WCout)
    t2 = make_row_toeplitz_blocks(w2 * s2, W).reshape(3 * WCout, WCout)
    b2_l = jnp.tile(b2, W).reshape(1, WCout)

    # Batch blocking: >= 2 grid steps when N >= 2 so v7x megacore has work to
    # split; cap rows/block so f32 intermediates stay ~5 MB (v7x VMEM = 64 MiB).
    NB = max(1, min((N + 1) // 2, 1024 // H))
    MB = NB * H

    cost = pl.CostEstimate(
        flops=2 * 2 * (N * H) * (3 * LANES) * WCout,    # two matmuls
        transcendentals=0,
        bytes_accessed=4 * (N * H * LANES + 2 * 3 * LANES * WCout
                            + WCout + N * H * WCout))

    out = pl.pallas_call(
        functools.partial(bridge_kernel, H=H),
        out_shape=jax.ShapeDtypeStruct((N * H, WCout), jnp.float32),
        grid_spec=pltpu.PrefetchScalarGridSpec(
            num_scalar_prefetch=0,
            grid=(pl.cdiv(N, NB),),
            in_specs=[
                pl.BlockSpec((MB, LANES), lambda i: (i, 0)),
                pl.BlockSpec((3 * LANES, WCout), lambda i: (0, 0)),
                pl.BlockSpec((3 * WCout, WCout), lambda i: (0, 0)),
                pl.BlockSpec((1, WCout), lambda i: (0, 0)),
            ],
            out_specs=pl.BlockSpec((MB, WCout), lambda i: (i, 0)),
        ),
        compiler_params=pltpu.CompilerParams(
            dimension_semantics=("parallel",)),
        cost_estimate=cost,
    )(x_slab, t1, t2, b2_l)

    # (N*H, W*Cout) -> NHWC -> NCHW
    out = out.reshape(N, H, W, Cout)
    return jnp.transpose(out, (0, 3, 1, 2))


# --------------------------------------------------------------------------
# Parameters / reference
# --------------------------------------------------------------------------
def make_params(key, in_channels, out_channels):
    """Deterministic synthetic parameters.

    Conv bias + eval-mode BatchNorm folded into per-channel (scale, shift):
        BN(conv(x) + cb) = scale * conv(x) + (scale * (cb - mean) + beta)
        scale = gamma / sqrt(var + eps)
    """
    eps = 1e-5
    ks = jax.random.split(key, 12)

    def conv_block(kw_, kb_, kg_, kbeta_, km_, kv_, cin, cout):
        w = 0.1 * jax.random.normal(kw_, (3, 3, cin, cout), jnp.float32)
        cb = 0.1 * jax.random.normal(kb_, (cout,), jnp.float32)
        gamma = 1.0 + 0.1 * jax.random.normal(kg_, (cout,), jnp.float32)
        beta = 0.1 * jax.random.normal(kbeta_, (cout,), jnp.float32)
        mean = 0.1 * jax.random.normal(km_, (cout,), jnp.float32)
        var = 0.5 + jnp.abs(jax.random.normal(kv_, (cout,), jnp.float32))
        scale = gamma / jnp.sqrt(var + eps)
        shift = scale * (cb - mean) + beta
        return w, scale, shift

    w1, s1, b1 = conv_block(*ks[0:6], in_channels, out_channels)
    w2, s2, b2 = conv_block(*ks[6:12], out_channels, out_channels)
    return (w1, s1, b1, w2, s2, b2)


def bridge_reference(x_nchw, params):
    """Pure-JAX reference (lax.conv) for correctness checking."""
    (w1, s1, b1, w2, s2, b2) = params
    x = jnp.transpose(x_nchw, (0, 2, 3, 1))

    def block(x, w, s, b):
        y = jax.lax.conv_general_dilated(
            x, w, window_strides=(1, 1), padding="SAME",
            dimension_numbers=("NHWC", "HWIO", "NHWC"))
        return jnp.maximum(y * s + b, 0.0)

    y = block(block(x, w1, s1, b1), w2, s2, b2)
    return jnp.transpose(y, (0, 3, 1, 2))


if __name__ == "__main__":
    N, Cin, Cout, H, W = 2, 4, 8, 16, 16
    key = jax.random.PRNGKey(0)
    kx, kp = jax.random.split(key)
    x = jax.random.normal(kx, (N, Cin, H, W), jnp.float32)
    params = make_params(kp, Cin, Cout)

    out = jax.block_until_ready(bridge_forward(x, params))
    ref = jax.block_until_ready(bridge_reference(x, params))

    assert out.shape == (N, Cout, H, W), out.shape
    assert jnp.allclose(out, ref, atol=1e-3, rtol=1e-3), float(
        jnp.max(jnp.abs(out - ref)))

    print("KERNEL_OK")
</pallas_src>

<mosaic_0001>
module attributes {stable_mosaic.version = 11 : i64} {
  func.func @bridge_kernel(%arg0: i32, %arg1: memref<16x128xf32, #tpu.memory_space<vmem>>, %arg2: memref<384x128xf32, #tpu.memory_space<vmem>>, %arg3: memref<384x128xf32, #tpu.memory_space<vmem>>, %arg4: memref<1x128xf32, #tpu.memory_space<vmem>>, %arg5: memref<16x128xf32, #tpu.memory_space<vmem>>) attributes {dimension_semantics = [#tpu.dimension_semantics<parallel>], iteration_bounds = array<i64: 2>, scalar_prefetch = 0 : i64, scratch_operands = 0 : i64, tpu.core_type = #tpu.core_type<tc>, window_params = [{transform_indices = @transform_0, window_bounds = array<i64: 16, 128>}, {pipeline_mode = #tpu.pipeline_mode<synchronous>, transform_indices = @transform_1, window_bounds = array<i64: 384, 128>}, {pipeline_mode = #tpu.pipeline_mode<synchronous>, transform_indices = @transform_2, window_bounds = array<i64: 384, 128>}, {pipeline_mode = #tpu.pipeline_mode<synchronous>, transform_indices = @transform_3, window_bounds = array<i64: 1, 128>}, {transform_indices = @transform_4, window_bounds = array<i64: 16, 128>}]} {
    %c0 = arith.constant 0 : index
    %c0_0 = arith.constant 0 : index
    %0 = vector.load %arg1[%c0, %c0_0] : memref<16x128xf32, #tpu.memory_space<vmem>>, vector<16x128xf32>
    %1 = tpu.iota {dimensions = array<i32: 0>} : vector<16x128xi32>
    %c16_i32 = arith.constant 16 : i32
    %c0_i32 = arith.constant 0 : i32
    %2 = arith.cmpi eq, %c16_i32, %c0_i32 : i32
    %c1_i32 = arith.constant 1 : i32
    %3 = arith.select %2, %c1_i32, %c16_i32 : i32
    %4 = vector.broadcast %3 : i32 to vector<16x128xi32>
    %5 = arith.remsi %1, %4 : vector<16x128xi32>
    %c0_i32_1 = arith.constant 0 : i32
    %6 = vector.broadcast %c0_i32_1 : i32 to vector<16x128xi32>
    %7 = arith.cmpi ne, %5, %6 : vector<16x128xi32>
    %c0_i32_2 = arith.constant 0 : i32
    %8 = vector.broadcast %c0_i32_2 : i32 to vector<16x128xi32>
    %9 = arith.cmpi slt, %5, %8 : vector<16x128xi32>
    %c0_i32_3 = arith.constant 0 : i32
    %10 = arith.cmpi slt, %3, %c0_i32_3 : i32
    %11 = vector.broadcast %10 : i1 to vector<16x128xi1>
    %12 = vector.broadcast %11 : vector<16x128xi1> to vector<16x128xi1>
    %13 = arith.xori %9, %12 : vector<16x128xi1>
    %14 = arith.andi %13, %7 : vector<16x128xi1>
    %15 = vector.broadcast %3 : i32 to vector<16x128xi32>
    %16 = arith.addi %5, %15 : vector<16x128xi32>
    %17 = arith.select %14, %16, %5 : vector<16x128xi1>, vector<16x128xi32>
    %c0_i32_4 = arith.constant 0 : i32
    %18 = vector.broadcast %c0_i32_4 : i32 to vector<16x128xi32>
    %19 = arith.cmpi sgt, %17, %18 : vector<16x128xi32>
    %c1_i32_5 = arith.constant 1 : i32
    %20 = tpu.dynamic_rotate %0 by %c1_i32_5 dim 0 : vector<16x128xf32>, i32 -> vector<16x128xf32>
    %cst = arith.constant 0.000000e+00 : f32
    %21 = vector.broadcast %cst : f32 to vector<16x128xf32>
    %22 = arith.select %19, %20, %21 : vector<16x128xi1>, vector<16x128xf32>
    %c15_i32 = arith.constant 15 : i32
    %23 = vector.broadcast %c15_i32 : i32 to vector<16x128xi32>
    %24 = arith.cmpi slt, %17, %23 : vector<16x128xi32>
    %c15_i32_6 = arith.constant 15 : i32
    %25 = tpu.dynamic_rotate %0 by %c15_i32_6 dim 0 : vector<16x128xf32>, i32 -> vector<16x128xf32>
    %cst_7 = arith.constant 0.000000e+00 : f32
    %26 = vector.broadcast %cst_7 : f32 to vector<16x128xf32>
    %27 = arith.select %24, %25, %26 : vector<16x128xi1>, vector<16x128xf32>
    %28 = tpu.concatenate %22, %0, %27 in 1 : vector<16x128xf32>, vector<16x128xf32>, vector<16x128xf32> -> vector<16x384xf32>
    %c0_8 = arith.constant 0 : index
    %c0_9 = arith.constant 0 : index
    %29 = vector.load %arg2[%c0_8, %c0_9] : memref<384x128xf32, #tpu.memory_space<vmem>>, vector<384x128xf32>
    %cst_10 = arith.constant dense<0.000000e+00> : vector<16x128xf32>
    %30 = tpu.matmul %28, %29, %cst_10 {dimension_numbers = #tpu.dot_dimension_numbers<[1], [0], [0], [1], [0, 0, 1, 1], [], []>} : vector<16x384xf32>, vector<384x128xf32>, vector<16x128xf32> -> vector<16x128xf32>
    %cst_11 = arith.constant 0.000000e+00 : f32
    %31 = vector.broadcast %cst_11 : f32 to vector<16x128xf32>
    %32 = arith.maximumf %30, %31 : vector<16x128xf32>
    %33 = tpu.iota {dimensions = array<i32: 0>} : vector<16x128xi32>
    %c16_i32_12 = arith.constant 16 : i32
    %c0_i32_13 = arith.constant 0 : i32
    %34 = arith.cmpi eq, %c16_i32_12, %c0_i32_13 : i32
    %c1_i32_14 = arith.constant 1 : i32
    %35 = arith.select %34, %c1_i32_14, %c16_i32_12 : i32
    %36 = vector.broadcast %35 : i32 to vector<16x128xi32>
    %37 = arith.remsi %33, %36 : vector<16x128xi32>
    %c0_i32_15 = arith.constant 0 : i32
    %38 = vector.broadcast %c0_i32_15 : i32 to vector<16x128xi32>
    %39 = arith.cmpi ne, %37, %38 : vector<16x128xi32>
    %c0_i32_16 = arith.constant 0 : i32
    %40 = vector.broadcast %c0_i32_16 : i32 to vector<16x128xi32>
    %41 = arith.cmpi slt, %37, %40 : vector<16x128xi32>
    %c0_i32_17 = arith.constant 0 : i32
    %42 = arith.cmpi slt, %35, %c0_i32_17 : i32
    %43 = vector.broadcast %42 : i1 to vector<16x128xi1>
    %44 = vector.broadcast %43 : vector<16x128xi1> to vector<16x128xi1>
    %45 = arith.xori %41, %44 : vector<16x128xi1>
    %46 = arith.andi %45, %39 : vector<16x128xi1>
    %47 = vector.broadcast %35 : i32 to vector<16x128xi32>
    %48 = arith.addi %37, %47 : vector<16x128xi32>
    %49 = arith.select %46, %48, %37 : vector<16x128xi1>, vector<16x128xi32>
    %c0_i32_18 = arith.constant 0 : i32
    %50 = vector.broadcast %c0_i32_18 : i32 to vector<16x128xi32>
    %51 = arith.cmpi sgt, %49, %50 : vector<16x128xi32>
    %c1_i32_19 = arith.constant 1 : i32
    %52 = tpu.dynamic_rotate %32 by %c1_i32_19 dim 0 : vector<16x128xf32>, i32 -> vector<16x128xf32>
    %cst_20 = arith.constant 0.000000e+00 : f32
    %53 = vector.broadcast %cst_20 : f32 to vector<16x128xf32>
    %54 = arith.select %51, %52, %53 : vector<16x128xi1>, vector<16x128xf32>
    %c15_i32_21 = arith.constant 15 : i32
    %55 = vector.broadcast %c15_i32_21 : i32 to vector<16x128xi32>
    %56 = arith.cmpi slt, %49, %55 : vector<16x128xi32>
    %c15_i32_22 = arith.constant 15 : i32
    %57 = tpu.dynamic_rotate %32 by %c15_i32_22 dim 0 : vector<16x128xf32>, i32 -> vector<16x128xf32>
    %cst_23 = arith.constant 0.000000e+00 : f32
    %58 = vector.broadcast %cst_23 : f32 to vector<16x128xf32>
    %59 = arith.select %56, %57, %58 : vector<16x128xi1>, vector<16x128xf32>
    %60 = tpu.concatenate %54, %32, %59 in 1 : vector<16x128xf32>, vector<16x128xf32>, vector<16x128xf32> -> vector<16x384xf32>
    %c0_24 = arith.constant 0 : index
    %c0_25 = arith.constant 0 : index
    %61 = vector.load %arg3[%c0_24, %c0_25] : memref<384x128xf32, #tpu.memory_space<vmem>>, vector<384x128xf32>
    %cst_26 = arith.constant dense<0.000000e+00> : vector<16x128xf32>
    %62 = tpu.matmul %60, %61, %cst_26 {dimension_numbers = #tpu.dot_dimension_numbers<[1], [0], [0], [1], [0, 0, 1, 1], [], []>} : vector<16x384xf32>, vector<384x128xf32>, vector<16x128xf32> -> vector<16x128xf32>
    %c0_27 = arith.constant 0 : index
    %c0_28 = arith.constant 0 : index
    %63 = vector.load %arg4[%c0_27, %c0_28] : memref<1x128xf32, #tpu.memory_space<vmem>>, vector<1x128xf32>
    %64 = vector.broadcast %63 : vector<1x128xf32> to vector<16x128xf32>
    %65 = arith.addf %62, %64 : vector<16x128xf32>
    %cst_29 = arith.constant 0.000000e+00 : f32
    %66 = vector.broadcast %cst_29 : f32 to vector<16x128xf32>
    %67 = arith.maximumf %65, %66 : vector<16x128xf32>
    %c0_30 = arith.constant 0 : index
    %c0_31 = arith.constant 0 : index
    %68 = vector.load %arg5[%c0_30, %c0_31] : memref<16x128xf32, #tpu.memory_space<vmem>>, vector<16x128xf32>
    tpu.vector_store %arg5[%c0_30, %c0_31], %67 {strides = array<i32>} : memref<16x128xf32, #tpu.memory_space<vmem>>, vector<16x128xf32>,
    return
  }
  func.func @transform_0(%arg0: i32) -> (i32, i32) {
    %c0_i32 = arith.constant 0 : i32
    %c0_i32_0 = arith.constant 0 : i32
    return %arg0, %c0_i32 : i32, i32
  }
  func.func @transform_1(%arg0: i32) -> (i32, i32) {
    %c0_i32 = arith.constant 0 : i32
    %c0_i32_0 = arith.constant 0 : i32
    %c0_i32_1 = arith.constant 0 : i32
    return %c0_i32, %c0_i32_0 : i32, i32
  }
  func.func @transform_2(%arg0: i32) -> (i32, i32) {
    %c0_i32 = arith.constant 0 : i32
    %c0_i32_0 = arith.constant 0 : i32
    %c0_i32_1 = arith.constant 0 : i32
    return %c0_i32, %c0_i32_0 : i32, i32
  }
  func.func @transform_3(%arg0: i32) -> (i32, i32) {
    %c0_i32 = arith.constant 0 : i32
    %c0_i32_0 = arith.constant 0 : i32
    %c0_i32_1 = arith.constant 0 : i32
    return %c0_i32, %c0_i32_0 : i32, i32
  }
  func.func @transform_4(%arg0: i32) -> (i32, i32) {
    %c0_i32 = arith.constant 0 : i32
    %c0_i32_0 = arith.constant 0 : i32
    return %arg0, %c0_i32 : i32, i32
  }
}

</mosaic_0001>

<llo_original>
// kernel: tpu_custom_call.1
$region0: #{tpu_custom_call.1}
  #allocation0 [shape = 'u32[]', space=smem, size = 0x4, offset = 0x4, fixed_abs, tag = 'smem constant byte address 0x4 - core index']
  #allocation1 [shape = 'u32[144,128]{1,0:T(1,128)}', space=vmem, size = 0x12000, scoped, tag = 'internal scratch']
  %s0 = inlined_call_operand.hbm [shape: f32[32,128], index: 0, kind: input, shape index: {}]
  %s1 = inlined_call_operand.hbm [shape: f32[384,128], index: 1, kind: input, shape index: {}]
  %s2 = inlined_call_operand.hbm [shape: f32[384,128], index: 2, kind: input, shape index: {}]
  %s3 = inlined_call_operand.vmem [shape: f32[1,128], index: 3, kind: input, shape index: {}]
  %s4 = inlined_call_operand.hbm [shape: f32[32,128], index: 4, kind: output, shape index: {}]
  %s5 = sld [smem:[#allocation0]]
  $region61: #{tpu_custom_call.1} parent=0
    _
  %s7 = ssub.s32 1, %s5
  %s8 = scalar_select 0, %s7, %s5
  $region1: #{tpu_custom_call.1} parent=0
    #allocation2 [shape = 'u8[16384]{0}', space=vmem, size = 0x4000, scoped, tag = 'input window, operand 0']
    #allocation3 [shape = 's32[2]{0}', space=sflag, size = 0x8, scoped, tag = 'scoped memory for tpu_custom_call.1']
    #allocation4 [shape = 's32[2]{0}', space=sflag, size = 0x8, scoped, tag = 'scoped memory for tpu_custom_call.1']
    #allocation5 [shape = 'u8[196608]{0}', space=vmem, size = 0x30000, scoped, tag = 'input window, operand 1, single buffered']
    #allocation6 [shape = 's32[1]{0}', space=sflag, size = 0x4, scoped, tag = 'scoped memory for tpu_custom_call.1']
    #allocation7 [shape = 'u8[196608]{0}', space=vmem, size = 0x30000, scoped, tag = 'input window, operand 2, single buffered']
    #allocation8 [shape = 'u8[16384]{0}', space=vmem, size = 0x4000, scoped, tag = 'output window, operand 0']
    %9 = vsyncpa [#allocation3], 0
    %s10 = scalar_lea.sflag [#allocation3], 1
    %11 = vsyncpa %s10, 0
    %12 = vsyncpa [#allocation6], 0
    %13 = vsyncpa [#allocation4], 0
    %s14 = scalar_lea.sflag [#allocation4], 1
    %15 = vsyncpa %s14, 0
    loop: start=0, step=1, limit=4
    $region2: #{tpu_custom_call.1} parent=1 // loop_pre_header
      _
    $region3: #{tpu_custom_call.1} parent=1 // loop_header
      %s17 = sphi 0, %s21
      %p18 = scmp.ge.s32.totalorder %s17, 4
      %s27 = sphi 0, %s29
      %s30 = sphi 0, %s27
      %s31 = sphi 0, %s30
      %s47 = sphi 0, %s31
      %s51 = sphi 0, %s51
      %s53 = sphi 0, %s51
      %s54 = sphi 0, %s53
      %s68 = sphi 0, %s54
      %s72 = sphi 0, %s72
      %s74 = sphi 0, %s72
      %s75 = sphi 0, %s74
      %s89 = sphi 0, %s75
      %s93 = sphi 0, %s93
      %s95 = sphi 0, %s93
      %s96 = sphi 0, %s95
      %s110 = sphi 0, %s96
      %s116 = sphi 0, %s118
      %s119 = sphi 0, %s116
      %s120 = sphi 0, %s119
      %s136 = sphi 0, %s120
    $region4: #{tpu_custom_call.1} parent=1 // loop_header_branch
      %20 = sbr.rel (%p18) target = $region8
    $region5: #{tpu_custom_call.1} parent=1 // loop_body
      %s22 = ssub.s32 %s17, 1
      %s23 = ssub.s32 %s17, 2
      %s24 = sadd.s32 %s17, 1
      %s25 = ssub.s32 %s17, %s24
      %p26 = scmp.eq.s32.totalorder %s25, 0
      %s28 = sadd.s32 %s27, 1
      %s29 = scalar_select %p26, %s27, %s28
      %p32 = pneg %p26
      %p33 = scmp.eq.s32.totalorder %s17, 1
      %p34 = por %p32, %p33
      %p35 = scmp.ne.s32.totalorder %s27, %s30
      %p36 = scmp.eq.s32.totalorder %s17, 0
      %p37 = por %p35, %p36
      %p38 = scmp.ne.s32.totalorder %s27, %s30
      %p39 = scmp.eq.s32.totalorder %s22, 1
      %p40 = por %p38, %p39
      %p41 = scmp.ne.s32.totalorder %s30, %s31
      %p42 = scmp.eq.s32.totalorder %s22, 0
      %p43 = por %p41, %p42
      %p44 = scmp.ne.s32.totalorder %s30, %s31
      %p45 = scmp.eq.s32.totalorder %s23, 1
      %p46 = por %p44, %p45
      %p48 = scmp.ne.s32.totalorder %s31, %s47
      %p49 = scmp.eq.s32.totalorder %s23, 0
      %p50 = por %p48, %p49
      %s52 = sadd.s32 %s51, 1
      %p55 = scmp.eq.s32.totalorder %s17, 1
      %p56 = scmp.ne.s32.totalorder %s51, %s53
      %p57 = scmp.eq.s32.totalorder %s17, 0
      %p58 = por %p56, %p57
      %p59 = scmp.ne.s32.totalorder %s51, %s53
      %p60 = scmp.eq.s32.totalorder %s22, 1
      %p61 = por %p59, %p60
      %p62 = scmp.ne.s32.totalorder %s53, %s54
      %p63 = scmp.eq.s32.totalorder %s22, 0
      %p64 = por %p62, %p63
      %p65 = scmp.ne.s32.totalorder %s53, %s54
      %p66 = scmp.eq.s32.totalorder %s23, 1
      %p67 = por %p65, %p66
      %p69 = scmp.ne.s32.totalorder %s54, %s68
      %p70 = scmp.eq.s32.totalorder %s23, 0
      %p71 = por %p69, %p70
      %s73 = sadd.s32 %s72, 1
      %p76 = scmp.eq.s32.totalorder %s17, 1
      %p77 = scmp.ne.s32.totalorder %s72, %s74
      %p78 = scmp.eq.s32.totalorder %s17, 0
      %p79 = por %p77, %p78
      %p80 = scmp.ne.s32.totalorder %s72, %s74
      %p81 = scmp.eq.s32.totalorder %s22, 1
      %p82 = por %p80, %p81
      %p83 = scmp.ne.s32.totalorder %s74, %s75
      %p84 = scmp.eq.s32.totalorder %s22, 0
      %p85 = por %p83, %p84
      %p86 = scmp.ne.s32.totalorder %s74, %s75
      %p87 = scmp.eq.s32.totalorder %s23, 1
      %p88 = por %p86, %p87
      %p90 = scmp.ne.s32.totalorder %s75, %s89
      %p91 = scmp.eq.s32.totalorder %s23, 0
      %p92 = por %p90, %p91
      %s94 = sadd.s32 %s93, 1
      %p97 = scmp.eq.s32.totalorder %s17, 1
      %p98 = scmp.ne.s32.totalorder %s93, %s95
      %p99 = scmp.eq.s32.totalorder %s17, 0
      %p100 = por %p98, %p99
      %p101 = scmp.ne.s32.totalorder %s93, %s95
      %p102 = scmp.eq.s32.totalorder %s22, 1
      %p103 = por %p101, %p102
      %p104 = scmp.ne.s32.totalorder %s95, %s96
      %p105 = scmp.eq.s32.totalorder %s22, 0
      %p106 = por %p104, %p105
      %p107 = scmp.ne.s32.totalorder %s95, %s96
      %p108 = scmp.eq.s32.totalorder %s23, 1
      %p109 = por %p107, %p108
      %p111 = scmp.ne.s32.totalorder %s96, %s110
      %p112 = scmp.eq.s32.totalorder %s23, 0
      %p113 = por %p111, %p112
      %s114 = ssub.s32 %s17, %s24
      %p115 = scmp.eq.s32.totalorder %s114, 0
      %s117 = sadd.s32 %s116, 1
      %s118 = scalar_select %p115, %s116, %s117
      %p121 = pneg %p115
      %p122 = scmp.eq.s32.totalorder %s17, 1
      %p123 = por %p121, %p122
      %p124 = scmp.ne.s32.totalorder %s116, %s119
      %p125 = scmp.eq.s32.totalorder %s17, 0
      %p126 = por %p124, %p125
      %p127 = scmp.ne.s32.totalorder %s116, %s119
      %p128 = scmp.eq.s32.totalorder %s22, 1
      %p129 = por %p127, %p128
      %p130 = scmp.ne.s32.totalorder %s119, %s120
      %p131 = scmp.eq.s32.totalorder %s22, 0
      %p132 = por %p130, %p131
      %p133 = scmp.ne.s32.totalorder %s119, %s120
      %p134 = scmp.eq.s32.totalorder %s23, 1
      %p135 = por %p133, %p134
      %p137 = scmp.ne.s32.totalorder %s120, %s136
      %p138 = scmp.eq.s32.totalorder %s23, 0
      %p139 = por %p137, %p138
      %p140 = scmp.le.s32.totalorder 1, %s17
      %p141 = scmp.lt.s32.totalorder %s17, 3
      %p142 = pnand %p140, %p141
      %p143 = pneg %p142
      // Predicated region
      $region9: #{tpu_custom_call.1} parent=5 // pred_check
        _
      $region10: #{tpu_custom_call.1} parent=5 // pred_check_branch
        %145 = sbr.rel (%p142) target = $region12
      $region11: #{tpu_custom_call.1} parent=5 // pred_region
        %s146 = ssub.s32 %s17, 1
        // Predicated region
        $region13: #{tpu_custom_call.1} parent=11 // pred_check
          %p147 = pneg %p64
        $region14: #{tpu_custom_call.1} parent=11 // pred_check_branch
          %149 = sbr.rel (%p147) target = $region16
        $region15: #{tpu_custom_call.1} parent=11 // pred_region
          %s151 = ssub.s32 6144, 6144
          %152 = vsyncadd [#allocation6], %s151
          %s153 = sshll.u32 [#allocation5], 4
          %s154 = int_to_ptr.vmem [resolvable:$true] %s153
          %159 = dma.hbm_to_vmem [thread:$0]  %s1, 6144, %s154, [#allocation6], 128, 128, 8
        $region16: #{tpu_custom_call.1} parent=11 // pred_fallthru
          _
        // Predicated region
        $region17: #{tpu_custom_call.1} parent=11 // pred_check
          %p160 = pneg %p85
        $region18: #{tpu_custom_call.1} parent=11 // pred_check_branch
          %162 = sbr.rel (%p160) target = $region20
        $region19: #{tpu_custom_call.1} parent=11 // pred_region
          %s164 = ssub.s32 6144, 6144
          %165 = vsyncadd [#allocation6], %s164
          %s166 = sshll.u32 [#allocation7], 4
          %s167 = int_to_ptr.vmem [resolvable:$true] %s166
          %172 = dma.hbm_to_vmem [thread:$0]  %s2, 6144, %s167, [#allocation6], 128, 128, 8
        $region20: #{tpu_custom_call.1} parent=11 // pred_fallthru
          _
        // Predicated region
        $region21: #{tpu_custom_call.1} parent=11 // pred_check
          %p173 = pneg %p106
        $region22: #{tpu_custom_call.1} parent=11 // pred_check_branch
          %175 = sbr.rel (%p173) target = $region24
        $region23: #{tpu_custom_call.1} parent=11 // pred_region
          _
        $region24: #{tpu_custom_call.1} parent=11 // pred_fallthru
          _
      $region12: #{tpu_custom_call.1} parent=5 // pred_fallthru
        _
      %p176 = scmp.lt.s32.totalorder %s17, 2
      // Predicated region
      $region25: #{tpu_custom_call.1} parent=5 // pred_check
        %p177 = pneg %p176
      $region26: #{tpu_custom_call.1} parent=5 // pred_check_branch
        %179 = sbr.rel (%p177) target = $region28
      $region27: #{tpu_custom_call.1} parent=5 // pred_region
        // Predicated region
        $region29: #{tpu_custom_call.1} parent=27 // pred_check
          %p180 = pneg %p37
        $region30: #{tpu_custom_call.1} parent=27 // pred_check_branch
          %182 = sbr.rel (%p180) target = $region32
        $region31: #{tpu_custom_call.1} parent=27 // pred_region
          %s183 = sand.u32 %s27, 1
          %s184 = scalar_lea.sflag [#allocation3], %s183
          %s185 = sand.u32 %s27, 1
          %s186 = smul.addr %s185, 16
          %s187 = scalar_lea.vmem [#allocation2], %s186
          %s188 = smul.u32 2, %s17
          %s190 = ssub.s32 256, 256
          %191 = vsyncadd %s184, %s190
          %s192 = smul.addr %s188, 128
          %s193 = scalar_lea.hbm %s0, %s192
          %s194 = sshll.u32 %s187, 4
          %s195 = int_to_ptr.vmem [resolvable:$true] %s194
          %200 = dma.hbm_to_vmem [thread:$0]  %s193, 256, %s195, %s184, 128, 128, 8
        $region32: #{tpu_custom_call.1} parent=27 // pred_fallthru
          _
      $region28: #{tpu_custom_call.1} parent=5 // pred_fallthru
        _
      %p201 = scmp.le.s32.totalorder 1, %s17
      %p202 = scmp.lt.s32.totalorder %s17, 3
      %p203 = pnand %p201, %p202
      %p204 = pneg %p203
      // Predicated region
      $region33: #{tpu_custom_call.1} parent=5 // pred_check
        _
      $region34: #{tpu_custom_call.1} parent=5 // pred_check_branch
        %206 = sbr.rel (%p203) target = $region36
      $region35: #{tpu_custom_call.1} parent=5 // pred_region
        %s207 = ssub.s32 %s17, 1
        %s208 = sand.u32 %s30, 1
        %s209 = scalar_lea.sflag [#allocation3], %s208
        %s210 = sand.u32 %s30, 1
        %s211 = smul.addr %s210, 16
        %s212 = scalar_lea.vmem [#allocation2], %s211
        // Predicated region
        $region37: #{tpu_custom_call.1} parent=35 // pred_check
          %p213 = pneg %p43
        $region38: #{tpu_custom_call.1} parent=35 // pred_check_branch
          %215 = sbr.rel (%p213) target = $region40
        $region39: #{tpu_custom_call.1} parent=35 // pred_region
          %216 = dma.done %s209, 256
        $region40: #{tpu_custom_call.1} parent=35 // pred_fallthru
          _
        // Predicated region
        $region41: #{tpu_custom_call.1} parent=35 // pred_check
          %p217 = pneg %p64
        $region42: #{tpu_custom_call.1} parent=35 // pred_check_branch
          %219 = sbr.rel (%p217) target = $region44
        $region43: #{tpu_custom_call.1} parent=35 // pred_region
          %220 = dma.done [#allocation6], 6144
        $region44: #{tpu_custom_call.1} parent=35 // pred_fallthru
          _
        // Predicated region
        $region45: #{tpu_custom_call.1} parent=35 // pred_check
          %p221 = pneg %p85
        $region46: #{tpu_custom_call.1} parent=35 // pred_check_branch
          %223 = sbr.rel (%p221) target = $region48
        $region47: #{tpu_custom_call.1} parent=35 // pred_region
          %224 = dma.done [#allocation6], 6144
        $region48: #{tpu_custom_call.1} parent=35 // pred_fallthru
          _
        %s225 = sand.u32 %s30, 1
        %s226 = scalar_lea.sflag [#allocation3], %s225
        %s227 = sand.u32 %s30, 1
        %s228 = smul.addr %s227, 16
        %s229 = scalar_lea.vmem [#allocation2], %s228
        %p230 = pneg %p43
        %p231 = pneg %p40
        %p232 = pneg %p64
        %p233 = pneg %p61
        %p234 = pneg %p85
        %p235 = pneg %p82
        %p236 = pneg %p106
        %p237 = pneg %p103
        %p238 = pneg %p132
        %p239 = pneg %p129
        %s240 = sand.u32 %s119, 1
        %s241 = scalar_lea.sflag [#allocation4], %s240
        %s242 = sand.u32 %s119, 1
        %s243 = smul.addr %s242, 16
        %s244 = scalar_lea.vmem [#allocation8], %s243
        %s245 = smul.u32 2, %s22
        %s246 = smul.u32 2, %s22
        %v247 = vld [vmem:[%s212] sm:$0xff]
        %v248 = vld [vmem:[%s212 + $0x8] sm:$0xff]
        %v249 = vlaneseq
        %v250 = vshrl.u32 %v249, 7
        %v251 = vadd.s32 %v250, 8
        %vm252 = vcmp.lt.s32.totalorder %v250, 0
        %v253 = vsub.s32 0, %v250
        %v254 = vsel %vm252, %v253, %v250
        %v255 = vshrl.u32 %v254, 4
        %v256 = vand.u32 %v254, 15
        %v257 = vsub.s32 0, %v256
        %v258 = vsel %vm252, %v257, %v256
        %vm259 = vcmp.lt.s32.totalorder %v251, 0
        %v260 = vsub.s32 0, %v251
        %v261 = vsel %vm259, %v260, %v251
        %v262 = vshrl.u32 %v261, 4
        %v263 = vand.u32 %v261, 15
        %v264 = vsub.s32 0, %v263
        %v265 = vsel %vm259, %v264, %v263
        %vm266 = vcmp.ne.s32.totalorder %v258, 0
        %vm267 = vcmp.ne.s32.totalorder %v265, 0
        %vm268 = vcmp.lt.s32.totalorder %v258, 0
        %vm269 = vcmp.lt.s32.totalorder %v265, 0
        %vm270 = vmand %vm268, %vm266
        %vm271 = vmand %vm269, %vm267
        %v272 = vadd.s32 %v258, 16
        %v273 = vadd.s32 %v265, 16
        %v274 = vsel %vm270, %v272, %v258
        %v275 = vsel %vm271, %v273, %v265
        %vm276 = vcmp.gt.s32.totalorder %v274, 0
        %vm277 = vcmp.gt.s32.totalorder %v275, 0
        %v278 = vrot.slane %v247, 7
        %v279 = vrot.slane %v248, 7
        %vm280 = vcmp.lt.s32.totalorder %v250, 1
        %v281 = vsel %vm280, %v278, %v279
        %v282 = vsel %vm280, %v279, %v278
        %v283 = vsel %vm276, %v282, 0.0
        %v284 = vsel %vm277, %v281, 0.0
        %vm285 = vcmp.lt.s32.totalorder %v274, 15
        %vm286 = vcmp.lt.s32.totalorder %v275, 15
        %v287 = vrot.slane %v247, 1
        %v288 = vrot.slane %v248, 1
        %vm289 = vcmp.lt.s32.totalorder %v250, 7
        %v290 = vsel %vm289, %v287, %v288
        %v291 = vsel %vm289, %v288, %v287
        %v292 = vsel %vm285, %v290, 0.0
        %v293 = vsel %vm286, %v291, 0.0
        %v294 = vld [vmem:[#allocation5] sm:$0xff]
        %v295 = vld [vmem:[#allocation5 + $0x8] sm:$0xff]
        %v296 = vld [vmem:[#allocation5 + $0x10] sm:$0xff]
        %v297 = vld [vmem:[#allocation5 + $0x18] sm:$0xff]
        %v298 = vld [vmem:[#allocation5 + $0x20] sm:$0xff]
        %v299 = vld [vmem:[#allocation5 + $0x28] sm:$0xff]
        %v300 = vld [vmem:[#allocation5 + $0x30] sm:$0xff]
        %v301 = vld [vmem:[#allocation5 + $0x38] sm:$0xff]
        %v302 = vld [vmem:[#allocation5 + $0x40] sm:$0xff]
        %v303 = vld [vmem:[#allocation5 + $0x48] sm:$0xff]
        %v304 = vld [vmem:[#allocation5 + $0x50] sm:$0xff]
        %v305 = vld [vmem:[#allocation5 + $0x58] sm:$0xff]
        %v306 = vld [vmem:[#allocation5 + $0x60] sm:$0xff]
        %v307 = vld [vmem:[#allocation5 + $0x68] sm:$0xff]
        %v308 = vld [vmem:[#allocation5 + $0x70] sm:$0xff]
        %v309 = vld [vmem:[#allocation5 + $0x78] sm:$0xff]
        %v310 = vld [vmem:[#allocation5 + $0x80] sm:$0xff]
        %v311 = vld [vmem:[#allocation5 + $0x88] sm:$0xff]
        %v312 = vld [vmem:[#allocation5 + $0x90] sm:$0xff]
        %v313 = vld [vmem:[#allocation5 + $0x98] sm:$0xff]
        %v314 = vld [vmem:[#allocation5 + $0xa0] sm:$0xff]
        %v315 = vld [vmem:[#allocation5 + $0xa8] sm:$0xff]
        %v316 = vld [vmem:[#allocation5 + $0xb0] sm:$0xff]
        %v317 = vld [vmem:[#allocation5 + $0xb8] sm:$0xff]
        %v318 = vld [vmem:[#allocation5 + $0xc0] sm:$0xff]
        %v319 = vld [vmem:[#allocation5 + $0xc8] sm:$0xff]
        %v320 = vld [vmem:[#allocation5 + $0xd0] sm:$0xff]
        %v321 = vld [vmem:[#allocation5 + $0xd8] sm:$0xff]
        %v322 = vld [vmem:[#allocation5 + $0xe0] sm:$0xff]
        %v323 = vld [vmem:[#allocation5 + $0xe8] sm:$0xff]
        %v324 = vld [vmem:[#allocation5 + $0xf0] sm:$0xff]
        %v325 = vld [vmem:[#allocation5 + $0xf8] sm:$0xff]
        %v326 = vld [vmem:[#allocation5 + $0x100] sm:$0xff]
        %v327 = vld [vmem:[#allocation5 + $0x108] sm:$0xff]
        %v328 = vld [vmem:[#allocation5 + $0x110] sm:$0xff]
        %v329 = vld [vmem:[#allocation5 + $0x118] sm:$0xff]
        %v330 = vld [vmem:[#allocation5 + $0x120] sm:$0xff]
        %v331 = vld [vmem:[#allocation5 + $0x128] sm:$0xff]
        %v332 = vld [vmem:[#allocation5 + $0x130] sm:$0xff]
        %v333 = vld [vmem:[#allocation5 + $0x138] sm:$0xff]
        %v334 = vld [vmem:[#allocation5 + $0x140] sm:$0xff]
        %v335 = vld [vmem:[#allocation5 + $0x148] sm:$0xff]
        %v336 = vld [vmem:[#allocation5 + $0x150] sm:$0xff]
        %v337 = vld [vmem:[#allocation5 + $0x158] sm:$0xff]
        %v338 = vld [vmem:[#allocation5 + $0x160] sm:$0xff]
        %v339 = vld [vmem:[#allocation5 + $0x168] sm:$0xff]
        %v340 = vld [vmem:[#allocation5 + $0x170] sm:$0xff]
        %v341 = vld [vmem:[#allocation5 + $0x178] sm:$0xff]
        %342 = vmatprep.subr.mxu0 0.0
        %343 = vmatpush1.msra.mxu0 %v309
        %344 = vmatprep.subr.mxu0 0.0
        %345 = vmatpush1.msra.mxu0 %v308
        %346 = vmatprep.subr.mxu0 0.0
        %347 = vmatpush1.msra.mxu0 %v307
        %348 = vmatprep.subr.mxu0 0.0
        %349 = vmatpush1.msra.mxu0 %v306
        %350 = vmatprep.subr.mxu0 0.0
        %351 = vmatpush1.msra.mxu0 %v305
        %352 = vmatprep.subr.mxu0 0.0
        %353 = vmatpush1.msra.mxu0 %v304
        %354 = vmatprep.subr.mxu0 0.0
        %355 = vmatpush1.msra.mxu0 %v303
        %356 = vmatprep.subr.mxu0 0.0
        %357 = vmatpush1.msra.mxu0 %v302
        %358 = vmatprep.subr.mxu0 0.0
        %359 = vmatpush1.msra.mxu0 %v301
        %360 = vmatprep.subr.mxu0 0.0
        %361 = vmatpush1.msra.mxu0 %v300
        %362 = vmatprep.subr.mxu0 0.0
        %363 = vmatpush1.msra.mxu0 %v299
        %364 = vmatprep.subr.mxu0 0.0
        %365 = vmatpush1.msra.mxu0 %v298
        %366 = vmatprep.subr.mxu0 0.0
        %367 = vmatpush1.msra.mxu0 %v297
        %368 = vmatprep.subr.mxu0 0.0
        %369 = vmatpush1.msra.mxu0 %v296
        %370 = vmatprep.subr.mxu0 0.0
        %371 = vmatpush1.msra.mxu0 %v295
        %372 = vmatprep.subr.mxu0 0.0
        %373 = vmatpush1.msra.mxu0 %v294
        %374 = vmatprep.subr.mxu0 0.0
        %375 = vmatpush2.msra.mxu0 %v325
        %376 = vmatprep.subr.mxu0 0.0
        %377 = vmatpush2.msra.mxu0 %v324
        %378 = vmatprep.subr.mxu0 0.0
        %379 = vmatpush2.msra.mxu0 %v323
        %380 = vmatprep.subr.mxu0 0.0
        %381 = vmatpush2.msra.mxu0 %v322
        %382 = vmatprep.subr.mxu0 0.0
        %383 = vmatpush2.msra.mxu0 %v321
        %384 = vmatprep.subr.mxu0 0.0
        %385 = vmatpush2.msra.mxu0 %v320
        %386 = vmatprep.subr.mxu0 0.0
        %387 = vmatpush2.msra.mxu0 %v319
        %388 = vmatprep.subr.mxu0 0.0
        %389 = vmatpush2.msra.mxu0 %v318
        %390 = vmatprep.subr.mxu0 0.0
        %391 = vmatpush2.msra.mxu0 %v317
        %392 = vmatprep.subr.mxu0 0.0
        %393 = vmatpush2.msra.mxu0 %v316
        %394 = vmatprep.subr.mxu0 0.0
        %395 = vmatpush2.msra.mxu0 %v315
        %396 = vmatprep.subr.mxu0 0.0
        %397 = vmatpush2.msra.mxu0 %v314
        %398 = vmatprep.subr.mxu0 0.0
        %399 = vmatpush2.msra.mxu0 %v313
        %400 = vmatprep.subr.mxu0 0.0
        %401 = vmatpush2.msra.mxu0 %v312
        %402 = vmatprep.subr.mxu0 0.0
        %403 = vmatpush2.msra.mxu0 %v311
        %404 = vmatprep.subr.mxu0 0.0
        %405 = vmatpush2.msra.mxu0 %v310
        %406 = vmatprep.mubr.f32.mxu0 %v247
        %407 = vmatmul.mubr.f32.gmra.mxu0 %v283
        %v408 = vpop.f32.mrf.mxu0
        %v409 = vadd.f32 0.0, %v408
        %v410 = vpop.f32.mrf.mxu0
        %411 = vmatprep.mubr.f32.mxu0 %v248
        %412 = vmatmul.mubr.f32.gmra.mxu0 %v284
        %v413 = vpop.f32.mrf.mxu0
        %v414 = vadd.f32 0.0, %v413
        %v415 = vpop.f32.mrf.mxu0
        %416 = vdwg.mxu0
        %417 = vmatprep.subr.mxu0 0.0
        %418 = vmatpush1.msra.mxu0 %v341
        %419 = vmatprep.subr.mxu0 0.0
        %420 = vmatpush1.msra.mxu0 %v340
        %421 = vmatprep.subr.mxu0 0.0
        %422 = vmatpush1.msra.mxu0 %v339
        %423 = vmatprep.subr.mxu0 0.0
        %424 = vmatpush1.msra.mxu0 %v338
        %425 = vmatprep.subr.mxu0 0.0
        %426 = vmatpush1.msra.mxu0 %v337
        %427 = vmatprep.subr.mxu0 0.0
        %428 = vmatpush1.msra.mxu0 %v336
        %429 = vmatprep.subr.mxu0 0.0
        %430 = vmatpush1.msra.mxu0 %v335
        %431 = vmatprep.subr.mxu0 0.0
        %432 = vmatpush1.msra.mxu0 %v334
        %433 = vmatprep.subr.mxu0 0.0
        %434 = vmatpush1.msra.mxu0 %v333
        %435 = vmatprep.subr.mxu0 0.0
        %436 = vmatpush1.msra.mxu0 %v332
        %437 = vmatprep.subr.mxu0 0.0
        %438 = vmatpush1.msra.mxu0 %v331
        %439 = vmatprep.subr.mxu0 0.0
        %440 = vmatpush1.msra.mxu0 %v330
        %441 = vmatprep.subr.mxu0 0.0
        %442 = vmatpush1.msra.mxu0 %v329
        %443 = vmatprep.subr.mxu0 0.0
        %444 = vmatpush1.msra.mxu0 %v328
        %445 = vmatprep.subr.mxu0 0.0
        %446 = vmatpush1.msra.mxu0 %v327
        %447 = vmatprep.subr.mxu0 0.0
        %448 = vmatpush1.msra.mxu0 %v326
        %449 = vmatprep.subr.mxu0 0.0
        %450 = vmatpush2.msra.mxu0 0.0
        %451 = vmatprep.subr.mxu0 0.0
        %452 = vmatpush2.msra.mxu0 0.0
        %453 = vmatprep.subr.mxu0 0.0
        %454 = vmatpush2.msra.mxu0 0.0
        %455 = vmatprep.subr.mxu0 0.0
        %456 = vmatpush2.msra.mxu0 0.0
        %457 = vmatprep.subr.mxu0 0.0
        %458 = vmatpush2.msra.mxu0 0.0
        %459 = vmatprep.subr.mxu0 0.0
        %460 = vmatpush2.msra.mxu0 0.0
        %461 = vmatprep.subr.mxu0 0.0
        %462 = vmatpush2.msra.mxu0 0.0
        %463 = vmatprep.subr.mxu0 0.0
        %464 = vmatpush2.msra.mxu0 0.0
        %465 = vmatprep.subr.mxu0 0.0
        %466 = vmatpush2.msra.mxu0 0.0
        %467 = vmatprep.subr.mxu0 0.0
        %468 = vmatpush2.msra.mxu0 0.0
        %469 = vmatprep.subr.mxu0 0.0
        %470 = vmatpush2.msra.mxu0 0.0
        %471 = vmatprep.subr.mxu0 0.0
        %472 = vmatpush2.msra.mxu0 0.0
        %473 = vmatprep.subr.mxu0 0.0
        %474 = vmatpush2.msra.mxu0 0.0
        %475 = vmatprep.subr.mxu0 0.0
        %476 = vmatpush2.msra.mxu0 0.0
        %477 = vmatprep.subr.mxu0 0.0
        %478 = vmatpush2.msra.mxu0 0.0
        %479 = vmatprep.subr.mxu0 0.0
        %480 = vmatpush2.msra.mxu0 0.0
        %481 = vmatprep.mubr.f32.mxu0 0.0
        %482 = vmatmul.mubr.f32.gmra.mxu0 %v292
        %v483 = vpop.f32.mrf.mxu0
        %v484 = vadd.f32 %v409, %v483
        %v485 = vpop.f32.mrf.mxu0
        %486 = vmatprep.mubr.f32.mxu0 0.0
        %487 = vmatmul.mubr.f32.gmra.mxu0 %v293
        %v488 = vpop.f32.mrf.mxu0
        %v489 = vadd.f32 %v414, %v488
        %v490 = vpop.f32.mrf.mxu0
        %491 = vdwg.mxu0
        %v492 = vmax.f32 %v484, 0.0
        %v493 = vmax.f32 %v489, 0.0
        %v494 = vrot.slane %v492, 7
        %v495 = vrot.slane %v493, 7
        %v496 = vsel %vm280, %v494, %v495
        %v497 = vsel %vm280, %v495, %v494
        %v498 = vsel %vm276, %v497, 0.0
        %v499 = vsel %vm277, %v496, 0.0
        %v500 = vrot.slane %v492, 1
        %v501 = vrot.slane %v493, 1
        %v502 = vsel %vm289, %v500, %v501
        %v503 = vsel %vm289, %v501, %v500
        %v504 = vsel %vm285, %v502, 0.0
        %v505 = vsel %vm286, %v503, 0.0
        %v506 = vld [vmem:[#allocation7] sm:$0xff]
        %v507 = vld [vmem:[#allocation7 + $0x8] sm:$0xff]
        %v508 = vld [vmem:[#allocation7 + $0x10] sm:$0xff]
        %v509 = vld [vmem:[#allocation7 + $0x18] sm:$0xff]
        %v510 = vld [vmem:[#allocation7 + $0x20] sm:$0xff]
        %v511 = vld [vmem:[#allocation7 + $0x28] sm:$0xff]
        %v512 = vld [vmem:[#allocation7 + $0x30] sm:$0xff]
        %v513 = vld [vmem:[#allocation7 + $0x38] sm:$0xff]
        %v514 = vld [vmem:[#allocation7 + $0x40] sm:$0xff]
        %v515 = vld [vmem:[#allocation7 + $0x48] sm:$0xff]
        %v516 = vld [vmem:[#allocation7 + $0x50] sm:$0xff]
        %v517 = vld [vmem:[#allocation7 + $0x58] sm:$0xff]
        %v518 = vld [vmem:[#allocation7 + $0x60] sm:$0xff]
        %v519 = vld [vmem:[#allocation7 + $0x68] sm:$0xff]
        %v520 = vld [vmem:[#allocation7 + $0x70] sm:$0xff]
        %v521 = vld [vmem:[#allocation7 + $0x78] sm:$0xff]
        %v522 = vld [vmem:[#allocation7 + $0x80] sm:$0xff]
        %v523 = vld [vmem:[#allocation7 + $0x88] sm:$0xff]
        %v524 = vld [vmem:[#allocation7 + $0x90] sm:$0xff]
        %v525 = vld [vmem:[#allocation7 + $0x98] sm:$0xff]
        %v526 = vld [vmem:[#allocation7 + $0xa0] sm:$0xff]
        %v527 = vld [vmem:[#allocation7 + $0xa8] sm:$0xff]
        %v528 = vld [vmem:[#allocation7 + $0xb0] sm:$0xff]
        %v529 = vld [vmem:[#allocation7 + $0xb8] sm:$0xff]
        %v530 = vld [vmem:[#allocation7 + $0xc0] sm:$0xff]
        %v531 = vld [vmem:[#allocation7 + $0xc8] sm:$0xff]
        %v532 = vld [vmem:[#allocation7 + $0xd0] sm:$0xff]
        %v533 = vld [vmem:[#allocation7 + $0xd8] sm:$0xff]
        %v534 = vld [vmem:[#allocation7 + $0xe0] sm:$0xff]
        %v535 = vld [vmem:[#allocation7 + $0xe8] sm:$0xff]
        %v536 = vld [vmem:[#allocation7 + $0xf0] sm:$0xff]
        %v537 = vld [vmem:[#allocation7 + $0xf8] sm:$0xff]
        %v538 = vld [vmem:[#allocation7 + $0x100] sm:$0xff]
        %v539 = vld [vmem:[#allocation7 + $0x108] sm:$0xff]
        %v540 = vld [vmem:[#allocation7 + $0x110] sm:$0xff]
        %v541 = vld [vmem:[#allocation7 + $0x118] sm:$0xff]
        %v542 = vld [vmem:[#allocation7 + $0x120] sm:$0xff]
        %v543 = vld [vmem:[#allocation7 + $0x128] sm:$0xff]
        %v544 = vld [vmem:[#allocation7 + $0x130] sm:$0xff]
        %v545 = vld [vmem:[#allocation7 + $0x138] sm:$0xff]
        %v546 = vld [vmem:[#allocation7 + $0x140] sm:$0xff]
        %v547 = vld [vmem:[#allocation7 + $0x148] sm:$0xff]
        %v548 = vld [vmem:[#allocation7 + $0x150] sm:$0xff]
        %v549 = vld [vmem:[#allocation7 + $0x158] sm:$0xff]
        %v550 = vld [vmem:[#allocation7 + $0x160] sm:$0xff]
        %v551 = vld [vmem:[#allocation7 + $0x168] sm:$0xff]
        %v552 = vld [vmem:[#allocation7 + $0x170] sm:$0xff]
        %v553 = vld [vmem:[#allocation7 + $0x178] sm:$0xff]
        %v554 = vld [vmem:[%s3] sm:$0x1]
        %v556 = vlaneseq
        %v557 = vshrl.u32 %v556, 7
        %v558 = vsub.s32 0, %v557
        %v559 = vrot.slane %v554, %v558
        %561 = vmatprep.subr.mxu0 0.0
        %562 = vmatpush1.msra.mxu0 %v521
        %563 = vmatprep.subr.mxu0 0.0
        %564 = vmatpush1.msra.mxu0 %v520
        %565 = vmatprep.subr.mxu0 0.0
        %566 = vmatpush1.msra.mxu0 %v519
        %567 = vmatprep.subr.mxu0 0.0
        %568 = vmatpush1.msra.mxu0 %v518
        %569 = vmatprep.subr.mxu0 0.0
        %570 = vmatpush1.msra.mxu0 %v517
        %571 = vmatprep.subr.mxu0 0.0
        %572 = vmatpush1.msra.mxu0 %v516
        %573 = vmatprep.subr.mxu0 0.0
        %574 = vmatpush1.msra.mxu0 %v515
        %575 = vmatprep.subr.mxu0 0.0
        %576 = vmatpush1.msra.mxu0 %v514
        %577 = vmatprep.subr.mxu0 0.0
        %578 = vmatpush1.msra.mxu0 %v513
        %579 = vmatprep.subr.mxu0 0.0
        %580 = vmatpush1.msra.mxu0 %v512
        %581 = vmatprep.subr.mxu0 0.0
        %582 = vmatpush1.msra.mxu0 %v511
        %583 = vmatprep.subr.mxu0 0.0
        %584 = vmatpush1.msra.mxu0 %v510
        %585 = vmatprep.subr.mxu0 0.0
        %586 = vmatpush1.msra.mxu0 %v509
        %587 = vmatprep.subr.mxu0 0.0
        %588 = vmatpush1.msra.mxu0 %v508
        %589 = vmatprep.subr.mxu0 0.0
        %590 = vmatpush1.msra.mxu0 %v507
        %591 = vmatprep.subr.mxu0 0.0
        %592 = vmatpush1.msra.mxu0 %v506
        %593 = vmatprep.subr.mxu0 0.0
        %594 = vmatpush2.msra.mxu0 %v537
        %595 = vmatprep.subr.mxu0 0.0
        %596 = vmatpush2.msra.mxu0 %v536
        %597 = vmatprep.subr.mxu0 0.0
        %598 = vmatpush2.msra.mxu0 %v535
        %599 = vmatprep.subr.mxu0 0.0
        %600 = vmatpush2.msra.mxu0 %v534
        %601 = vmatprep.subr.mxu0 0.0
        %602 = vmatpush2.msra.mxu0 %v533
        %603 = vmatprep.subr.mxu0 0.0
        %604 = vmatpush2.msra.mxu0 %v532
        %605 = vmatprep.subr.mxu0 0.0
        %606 = vmatpush2.msra.mxu0 %v531
        %607 = vmatprep.subr.mxu0 0.0
        %608 = vmatpush2.msra.mxu0 %v530
        %609 = vmatprep.subr.mxu0 0.0
        %610 = vmatpush2.msra.mxu0 %v529
        %611 = vmatprep.subr.mxu0 0.0
        %612 = vmatpush2.msra.mxu0 %v528
        %613 = vmatprep.subr.mxu0 0.0
        %614 = vmatpush2.msra.mxu0 %v527
        %615 = vmatprep.subr.mxu0 0.0
        %616 = vmatpush2.msra.mxu0 %v526
        %617 = vmatprep.subr.mxu0 0.0
        %618 = vmatpush2.msra.mxu0 %v525
        %619 = vmatprep.subr.mxu0 0.0
        %620 = vmatpush2.msra.mxu0 %v524
        %621 = vmatprep.subr.mxu0 0.0
        %622 = vmatpush2.msra.mxu0 %v523
        %623 = vmatprep.subr.mxu0 0.0
        %624 = vmatpush2.msra.mxu0 %v522
        %625 = vmatprep.mubr.f32.mxu0 %v492
        %626 = vmatmul.mubr.f32.gmra.mxu0 %v498
        %v627 = vpop.f32.mrf.mxu0
        %v628 = vadd.f32 %v559, %v627
        %v629 = vpop.f32.mrf.mxu0
        %630 = vmatprep.mubr.f32.mxu0 %v493
        %631 = vmatmul.mubr.f32.gmra.mxu0 %v499
        %v632 = vpop.f32.mrf.mxu0
        %v633 = vadd.f32 %v559, %v632
        %v634 = vpop.f32.mrf.mxu0
        %635 = vdwg.mxu0
        %636 = vmatprep.subr.mxu0 0.0
        %637 = vmatpush1.msra.mxu0 %v553
        %638 = vmatprep.subr.mxu0 0.0
        %639 = vmatpush1.msra.mxu0 %v552
        %640 = vmatprep.subr.mxu0 0.0
        %641 = vmatpush1.msra.mxu0 %v551
        %642 = vmatprep.subr.mxu0 0.0
        %643 = vmatpush1.msra.mxu0 %v550
        %644 = vmatprep.subr.mxu0 0.0
        %645 = vmatpush1.msra.mxu0 %v549
        %646 = vmatprep.subr.mxu0 0.0
        %647 = vmatpush1.msra.mxu0 %v548
        %648 = vmatprep.subr.mxu0 0.0
        %649 = vmatpush1.msra.mxu0 %v547
        %650 = vmatprep.subr.mxu0 0.0
        %651 = vmatpush1.msra.mxu0 %v546
        %652 = vmatprep.subr.mxu0 0.0
        %653 = vmatpush1.msra.mxu0 %v545
        %654 = vmatprep.subr.mxu0 0.0
        %655 = vmatpush1.msra.mxu0 %v544
        %656 = vmatprep.subr.mxu0 0.0
        %657 = vmatpush1.msra.mxu0 %v543
        %658 = vmatprep.subr.mxu0 0.0
        %659 = vmatpush1.msra.mxu0 %v542
        %660 = vmatprep.subr.mxu0 0.0
        %661 = vmatpush1.msra.mxu0 %v541
        %662 = vmatprep.subr.mxu0 0.0
        %663 = vmatpush1.msra.mxu0 %v540
        %664 = vmatprep.subr.mxu0 0.0
        %665 = vmatpush1.msra.mxu0 %v539
        %666 = vmatprep.subr.mxu0 0.0
        %667 = vmatpush1.msra.mxu0 %v538
        %668 = vmatprep.subr.mxu0 0.0
        %669 = vmatpush2.msra.mxu0 0.0
        %670 = vmatprep.subr.mxu0 0.0
        %671 = vmatpush2.msra.mxu0 0.0
        %672 = vmatprep.subr.mxu0 0.0
        %673 = vmatpush2.msra.mxu0 0.0
        %674 = vmatprep.subr.mxu0 0.0
        %675 = vmatpush2.msra.mxu0 0.0
        %676 = vmatprep.subr.mxu0 0.0
        %677 = vmatpush2.msra.mxu0 0.0
        %678 = vmatprep.subr.mxu0 0.0
        %679 = vmatpush2.msra.mxu0 0.0
        %680 = vmatprep.subr.mxu0 0.0
        %681 = vmatpush2.msra.mxu0 0.0
        %682 = vmatprep.subr.mxu0 0.0
        %683 = vmatpush2.msra.mxu0 0.0
        %684 = vmatprep.subr.mxu0 0.0
        %685 = vmatpush2.msra.mxu0 0.0
        %686 = vmatprep.subr.mxu0 0.0
        %687 = vmatpush2.msra.mxu0 0.0
        %688 = vmatprep.subr.mxu0 0.0
        %689 = vmatpush2.msra.mxu0 0.0
        %690 = vmatprep.subr.mxu0 0.0
        %691 = vmatpush2.msra.mxu0 0.0
        %692 = vmatprep.subr.mxu0 0.0
        %693 = vmatpush2.msra.mxu0 0.0
        %694 = vmatprep.subr.mxu0 0.0
        %695 = vmatpush2.msra.mxu0 0.0
        %696 = vmatprep.subr.mxu0 0.0
        %697 = vmatpush2.msra.mxu0 0.0
        %698 = vmatprep.subr.mxu0 0.0
        %699 = vmatpush2.msra.mxu0 0.0
        %700 = vmatprep.mubr.f32.mxu0 0.0
        %701 = vmatmul.mubr.f32.gmra.mxu0 %v504
        %v702 = vpop.f32.mrf.mxu0
        %v703 = vadd.f32 %v628, %v702
        %v704 = vpop.f32.mrf.mxu0
        %705 = vmatprep.mubr.f32.mxu0 0.0
        %706 = vmatmul.mubr.f32.gmra.mxu0 %v505
        %v707 = vpop.f32.mrf.mxu0
        %v708 = vadd.f32 %v633, %v707
        %v709 = vpop.f32.mrf.mxu0
        %710 = vdwg.mxu0
        %v711 = vmax.f32 %v703, 0.0
        %v712 = vmax.f32 %v708, 0.0
        %713 = vst [vmem:[%s244] sm:$0xff] %v711
        %714 = vst [vmem:[%s244 + $0x8] sm:$0xff] %v712
        %s715 = sand.u32 %s119, 1
        %s716 = scalar_lea.sflag [#allocation4], %s715
        %s717 = sand.u32 %s119, 1
        %s718 = smul.addr %s717, 16
        %s719 = scalar_lea.vmem [#allocation8], %s718
        // Predicated region
        $region49: #{tpu_custom_call.1} parent=35 // pred_check
          %p720 = pneg %p129
        $region50: #{tpu_custom_call.1} parent=35 // pred_check_branch
          %722 = sbr.rel (%p720) target = $region52
        $region51: #{tpu_custom_call.1} parent=35 // pred_region
          %s723 = smul.u32 2, %s22
          %s725 = ssub.s32 256, 256
          %726 = vsyncadd %s716, %s725
          %s727 = smul.addr %s723, 128
          %s728 = scalar_lea.hbm %s4, %s727
          %s729 = sshll.u32 %s719, 4
          %s730 = int_to_ptr.vmem [resolvable:$true] %s729
          %735 = dma.vmem_to_hbm [thread:$0]  %s730, 256, %s728, %s716, 128, 128, 8
        $region52: #{tpu_custom_call.1} parent=35 // pred_fallthru
          _
      $region36: #{tpu_custom_call.1} parent=5 // pred_fallthru
        _
      %p736 = scmp.le.s32.totalorder 2, %s17
      // Predicated region
      $region53: #{tpu_custom_call.1} parent=5 // pred_check
        %p737 = pneg %p736
      $region54: #{tpu_custom_call.1} parent=5 // pred_check_branch
        %739 = sbr.rel (%p737) target = $region56
      $region55: #{tpu_custom_call.1} parent=5 // pred_region
        %s740 = ssub.s32 %s17, 2
        // Predicated region
        $region57: #{tpu_custom_call.1} parent=55 // pred_check
          %p741 = pneg %p135
        $region58: #{tpu_custom_call.1} parent=55 // pred_check_branch
          %743 = sbr.rel (%p741) target = $region60
        $region59: #{tpu_custom_call.1} parent=55 // pred_region
          %s744 = sand.u32 %s120, 1
          %s745 = scalar_lea.sflag [#allocation4], %s744
          %s746 = sand.u32 %s120, 1
          %s747 = smul.addr %s746, 16
          %s748 = scalar_lea.vmem [#allocation8], %s747
          %749 = dma.done %s745, 256
        $region60: #{tpu_custom_call.1} parent=55 // pred_fallthru
          _
      $region56: #{tpu_custom_call.1} parent=5 // pred_fallthru
        _
    $region6: #{tpu_custom_call.1} parent=1 // loop_footer
      %s21 = sadd.s32 1, %s17
    $region7: #{tpu_custom_call.1} parent=1 // loop_footer_branch
      %16 = sbr.rel target = $region3
    $region8: #{tpu_custom_call.1} parent=1 // loop_exit
      _
    %750 = vsyncpa [#allocation3], 1
    %s751 = scalar_lea.sflag [#allocation3], 1
    %752 = vsyncpa %s751, 1
    %753 = vsyncpa [#allocation6], 1
    %754 = vsyncpa [#allocation4], 1
    %s755 = scalar_lea.sflag [#allocation4], 1
    %756 = vsyncpa %s755, 1

</llo_original>
